<compile_context>
chip_gen: v7x
topology: tpu7x:2x2x1
jax: 0.10.0
libtpu: 0.0.40
codegen_flags: <defaults>
</compile_context>

<pallas_src>
import functools

import jax
import jax.numpy as jnp
from jax.experimental import pallas as pl
from jax.experimental.pallas import tpu as pltpu


# ---------------------------------------------------------------------------
# Fused single-pass kernel: SE gate folded into w2, 1x1 conv on the MXU,
# BN stats accumulated in VMEM scratch, normalization applied in-place on the
# last grid step.  The full [N, Cout, HWp] output stays resident in VMEM.
# ---------------------------------------------------------------------------
def _fused_kernel(se_ref, w1_ref, b1_ref, x_ref, w2_ref, gamma_ref, beta_ref,
                  out_ref, w2g_ref, sum_ref, sumsq_ref,
                  *, inv_count, eps, hw_tile, num_tiles):
    n = pl.program_id(0)
    t = pl.program_id(1)

    @pl.when((n == 0) & (t == 0))
    def _():
        sum_ref[...] = jnp.zeros_like(sum_ref)
        sumsq_ref[...] = jnp.zeros_like(sumsq_ref)

    # SE gate sigmoid(W1 @ se + b1), folded into the conv weights once per batch element.
    @pl.when(t == 0)
    def _():
        logits = jnp.sum(w1_ref[...] * se_ref[...], axis=0, keepdims=True) + b1_ref[...]
        gate = jax.nn.sigmoid(logits)                                # [1, Cmid]
        w2g_ref[...] = (w2_ref[...] * gate).astype(jnp.bfloat16)     # [Cout, Cmid]

    # 1x1 conv (no bias): bf16 MXU operands, f32 accumulation.
    y = jnp.dot(w2g_ref[...], x_ref[...].astype(jnp.bfloat16),
                preferred_element_type=jnp.float32)                  # [Cout, hw_tile]

    if num_tiles == 1:
        out_ref[n] = y.astype(out_ref.dtype)
    else:
        col = t * hw_tile
        if hw_tile % 128 == 0:
            col = pl.multiple_of(col, 128)
        out_ref[n, :, pl.ds(col, hw_tile)] = y.astype(out_ref.dtype)

    # BatchNorm batch statistics (per output channel): lane-axis reductions.
    sum_ref[...] += jnp.sum(y, axis=1, keepdims=True)                # [Cout, 1]
    sumsq_ref[...] += jnp.sum(y * y, axis=1, keepdims=True)          # [Cout, 1]

    # Last grid step: normalize the whole resident output in place.
    @pl.when((n == pl.num_programs(0) - 1) & (t == pl.num_programs(1) - 1))
    def _():
        mean = sum_ref[...] * inv_count
        var = jnp.maximum(sumsq_ref[...] * inv_count - mean * mean, 0.0)
        inv = jax.lax.rsqrt(var + eps)
        scale = gamma_ref[...] * inv                                 # [Cout, 1]
        shift = beta_ref[...] - mean * scale                         # [Cout, 1]
        out_ref[...] = out_ref[...] * scale[None] + shift[None]


# ---------------------------------------------------------------------------
# Two-pass fallback (output too large to stay resident in VMEM).
# Pass 1: gated conv -> bf16 y + per-batch partial stats (batch axis megacore-safe).
# ---------------------------------------------------------------------------
def _p1_kernel(se_ref, w1_ref, b1_ref, x_ref, w2_ref,
               y_ref, psum_ref, psumsq_ref, w2g_ref):
    t = pl.program_id(1)

    @pl.when(t == 0)
    def _():
        logits = jnp.sum(w1_ref[...] * se_ref[...], axis=0, keepdims=True) + b1_ref[...]
        gate = jax.nn.sigmoid(logits)                                # [1, Cmid]
        w2g_ref[...] = (w2_ref[...] * gate).astype(jnp.bfloat16)     # [Cout, Cmid]
        psum_ref[...] = jnp.zeros_like(psum_ref)
        psumsq_ref[...] = jnp.zeros_like(psumsq_ref)

    y = jnp.dot(w2g_ref[...], x_ref[...].astype(jnp.bfloat16),
                preferred_element_type=jnp.float32)                  # [Cout, hw_tile]
    y_ref[...] = y.astype(y_ref.dtype)                               # bf16 HBM intermediate
    psum_ref[...] += jnp.sum(y, axis=1, keepdims=True)
    psumsq_ref[...] += jnp.sum(y * y, axis=1, keepdims=True)


# Pass 2: pure FMA with precomputed scale/shift.
def _p2_kernel(y_ref, scale_ref, shift_ref, out_ref):
    out_ref[...] = (y_ref[...].astype(jnp.float32) * scale_ref[...]
                    + shift_ref[...]).astype(out_ref.dtype)


def _choose_spatial_tiling(hw, target=512):
    """Return (hw_tile, hw_padded): tile is a 128-multiple (or the full row)."""
    if hw <= target:
        return hw, hw
    for t in range(target, 127, -128):
        if hw % t == 0:
            return t, hw
    padded = -(-hw // 128) * 128
    for t in range(target, 127, -128):
        if padded % t == 0:
            return t, padded
    return 128, padded


def _vmem_tile_bytes(rows, cols, itemsize):
    """Approximate VMEM footprint of a 2-D tile with (sublane, 128-lane) padding."""
    sublane = 8 * (4 // itemsize)
    r = -(-rows // sublane) * sublane
    c = -(-cols // 128) * 128
    return r * c * itemsize


@functools.partial(jax.jit, static_argnames=("eps", "hw_tile", "force_two_pass"))
def fused_se_conv_bn(x_nchw, se_nchw, w1, b1, w2, gamma, beta,
                     eps=1e-3, hw_tile=None, force_two_pass=False):
    """x_nchw: [N, Cmid, H, W], se_nchw: [N, Cse, 1, 1], w1: [Cmid, Cse], b1: [Cmid],
       w2: [Cout, Cmid], gamma/beta: [Cout].  Returns [N, Cout, H, W] float32."""
    N, Cmid, H, W = x_nchw.shape
    Cse = se_nchw.shape[1]
    Cout = w2.shape[0]
    HW = H * W

    if hw_tile is None:
        hw_tile, HWp = _choose_spatial_tiling(HW)
    else:
        assert HW % hw_tile == 0, "explicit hw_tile must divide H*W"
        HWp = HW
    num_tiles = HWp // hw_tile
    assert num_tiles == 1 or hw_tile % 128 == 0, "multi-tile hw_tile must be 128-multiple"

    # Layout prep: NCHW kept (HW on the lane axis); only free reshapes + a tiny w1
    # transpose so the SE gate comes out lane-major (no in-kernel transpose).
    x3 = x_nchw.reshape(N, Cmid, HW).astype(jnp.float32)
    if HWp != HW:
        x3 = jnp.pad(x3, ((0, 0), (0, 0), (0, HWp - HW)))  # zero cols: stats unaffected
    se3 = se_nchw.reshape(N, Cse, 1).astype(jnp.float32)
    w1_m = jnp.transpose(w1.reshape(Cmid, Cse)).astype(jnp.float32)   # [Cse, Cmid]
    b1_m = b1.reshape(1, Cmid).astype(jnp.float32)
    w2_bf = w2.reshape(Cout, Cmid).astype(jnp.bfloat16)
    gamma_m = gamma.reshape(Cout, 1).astype(jnp.float32)
    beta_m = beta.reshape(Cout, 1).astype(jnp.float32)

    inv_count = 1.0 / float(N * HW)
    grid = (N, num_tiles)
    resident2 = lambda n, t: (0, 0)

    # VMEM accounting (padded tiles; double-buffering where applicable).
    common = (2 * _vmem_tile_bytes(Cmid, hw_tile, 4)        # x tile, double buffered
              + 3 * _vmem_tile_bytes(Cout, Cmid, 2)         # w2 (x2) + gated-w2 scratch
              + 2 * _vmem_tile_bytes(Cse, Cmid, 4)          # w1
              + 2 * _vmem_tile_bytes(1, Cmid, 4)            # b1
              + 2 * _vmem_tile_bytes(Cse, 1, 4)             # se
              + 8 * _vmem_tile_bytes(Cout, 1, 4))           # gamma/beta/sum/sumsq
    out_resident = N * _vmem_tile_bytes(Cout, HWp, 4)
    fused_bytes = common + 2 * out_resident
    two_pass_bytes = common + 2 * (_vmem_tile_bytes(Cout, hw_tile, 2)
                                   + _vmem_tile_bytes(Cout, hw_tile, 4))

    try:
        vmem_cap = int(pltpu.get_tpu_info().vmem_capacity_bytes)
    except Exception:
        vmem_cap = 64 * 2**20                               # v7x-safe default
    budget = min(int(0.4 * vmem_cap), 24 * 2**20)
    use_fused = (not force_two_pass) and (fused_bytes <= budget)

    path_bytes = fused_bytes if use_fused else two_pass_bytes
    vmem_limit = int(min(max(2 * path_bytes, 16 * 2**20), int(0.6 * vmem_cap)))

    flops_main = 2 * N * HWp * Cmid * Cout

    if use_fused:
        out3 = pl.pallas_call(
            functools.partial(_fused_kernel, inv_count=inv_count, eps=float(eps),
                              hw_tile=hw_tile, num_tiles=num_tiles),
            out_shape=jax.ShapeDtypeStruct((N, Cout, HWp), jnp.float32),
            grid=grid,
            in_specs=[
                pl.BlockSpec((None, Cse, 1), lambda n, t: (n, 0, 0)),          # se
                pl.BlockSpec((Cse, Cmid), resident2),                          # w1^T
                pl.BlockSpec((1, Cmid), resident2),                            # b1
                pl.BlockSpec((None, Cmid, hw_tile), lambda n, t: (n, 0, t)),   # x
                pl.BlockSpec((Cout, Cmid), resident2),                         # w2 (bf16)
                pl.BlockSpec((Cout, 1), resident2),                            # gamma
                pl.BlockSpec((Cout, 1), resident2),                            # beta
            ],
            # Output resident across the whole grid; written back once at the end.
            out_specs=pl.BlockSpec((N, Cout, HWp), lambda n, t: (0, 0, 0)),
            scratch_shapes=[pltpu.VMEM((Cout, Cmid), jnp.bfloat16),            # gated w2
                            pltpu.VMEM((Cout, 1), jnp.float32),                # sum
                            pltpu.VMEM((Cout, 1), jnp.float32)],               # sumsq
            compiler_params=pltpu.CompilerParams(
                dimension_semantics=("arbitrary", "arbitrary"),
                vmem_limit_bytes=vmem_limit),
            cost_estimate=pl.CostEstimate(
                flops=flops_main + 2 * N * (Cout * Cmid + Cmid * Cse) + 3 * N * Cout * HWp,
                transcendentals=N * Cmid + Cout,
                bytes_accessed=4 * N * Cmid * HWp + 4 * N * Cout * HWp
                               + 2 * Cout * Cmid + 4 * Cse * Cmid),
        )(se3, w1_m, b1_m, x3, w2_bf, gamma_m, beta_m)
    else:
        # Fallback: bf16 y intermediate + per-batch partial stats (batch axis 'parallel'
        # is megacore-safe on v7x), scale/shift hoisted between the two calls.
        y_bf, psum, psumsq = pl.pallas_call(
            _p1_kernel,
            out_shape=(jax.ShapeDtypeStruct((N, Cout, HWp), jnp.bfloat16),
                       jax.ShapeDtypeStruct((N, Cout, 1), jnp.float32),
                       jax.ShapeDtypeStruct((N, Cout, 1), jnp.float32)),
            grid=grid,
            in_specs=[
                pl.BlockSpec((None, Cse, 1), lambda n, t: (n, 0, 0)),
                pl.BlockSpec((Cse, Cmid), resident2),
                pl.BlockSpec((1, Cmid), resident2),
                pl.BlockSpec((None, Cmid, hw_tile), lambda n, t: (n, 0, t)),
                pl.BlockSpec((Cout, Cmid), resident2),
            ],
            out_specs=(
                pl.BlockSpec((None, Cout, hw_tile), lambda n, t: (n, 0, t)),   # y (bf16)
                pl.BlockSpec((None, Cout, 1), lambda n, t: (n, 0, 0)),         # partial sum
                pl.BlockSpec((None, Cout, 1), lambda n, t: (n, 0, 0)),         # partial sumsq
            ),
            scratch_shapes=[pltpu.VMEM((Cout, Cmid), jnp.bfloat16)],
            compiler_params=pltpu.CompilerParams(
                dimension_semantics=("parallel", "arbitrary"),
                vmem_limit_bytes=vmem_limit),
            cost_estimate=pl.CostEstimate(
                flops=flops_main + 2 * N * (Cout * Cmid + Cmid * Cse),
                transcendentals=N * Cmid,
                bytes_accessed=4 * N * Cmid * HWp + 2 * N * Cout * HWp + 2 * Cout * Cmid),
        )(se3, w1_m, b1_m, x3, w2_bf)

        # Tiny global reduction + BN affine hoist outside the kernels.
        bn_sum = jnp.sum(psum, axis=0)                       # [Cout, 1]
        bn_sumsq = jnp.sum(psumsq, axis=0)
        mean = bn_sum * inv_count
        var = jnp.maximum(bn_sumsq * inv_count - mean * mean, 0.0)
        inv = jax.lax.rsqrt(var + float(eps))
        scale = gamma_m * inv
        shift = beta_m - mean * scale

        out3 = pl.pallas_call(
            _p2_kernel,
            out_shape=jax.ShapeDtypeStruct((N, Cout, HWp), jnp.float32),
            grid=grid,
            in_specs=[
                pl.BlockSpec((None, Cout, hw_tile), lambda n, t: (n, 0, t)),
                pl.BlockSpec((Cout, 1), resident2),
                pl.BlockSpec((Cout, 1), resident2),
            ],
            out_specs=pl.BlockSpec((None, Cout, hw_tile), lambda n, t: (n, 0, t)),
            compiler_params=pltpu.CompilerParams(
                dimension_semantics=("parallel", "parallel"),
                vmem_limit_bytes=vmem_limit),
            cost_estimate=pl.CostEstimate(
                flops=2 * N * Cout * HWp, transcendentals=0,
                bytes_accessed=6 * N * Cout * HWp),
        )(y_bf, scale, shift)

    if HWp != HW:
        out3 = out3[:, :, :HW]
    return out3.reshape(N, Cout, H, W)


def _reference(x_nchw, se_nchw, w1, b1, w2, gamma, beta, eps=1e-3, y_bf16=False):
    """Pure-JAX reference mirroring kernel numerics (gate folded into bf16 w2, f32 accum)."""
    N = x_nchw.shape[0]
    se2 = se_nchw.reshape(N, -1)                                     # [N, Cse]
    logits = se2 @ w1.T + b1[None, :]
    gate = jax.nn.sigmoid(logits)                                    # [N, Cmid]
    w2b = w2.astype(jnp.bfloat16).astype(jnp.float32)
    w2g = (w2b[None, :, :] * gate[:, None, :]).astype(jnp.bfloat16)  # [N, Cout, Cmid]
    y = jnp.einsum('noc,nchw->nohw', w2g, x_nchw.astype(jnp.bfloat16),
                   preferred_element_type=jnp.float32)
    mean = y.mean(axis=(0, 2, 3), keepdims=True)
    var = ((y - mean) ** 2).mean(axis=(0, 2, 3), keepdims=True)      # biased (training BN)
    scale = gamma.reshape(1, -1, 1, 1) * jax.lax.rsqrt(var + eps)
    shift = beta.reshape(1, -1, 1, 1) - mean * scale
    y_used = y.astype(jnp.bfloat16).astype(jnp.float32) if y_bf16 else y
    return y_used * scale + shift


if __name__ == "__main__":
    def make_inputs(key, N, Cse, Cmid, Cout, H, W):
        ks = jax.random.split(key, 7)
        x = jax.random.normal(ks[0], (N, Cmid, H, W), jnp.float32)
        se = jax.random.normal(ks[1], (N, Cse, 1, 1), jnp.float32)
        w1 = jax.random.normal(ks[2], (Cmid, Cse), jnp.float32) / (Cse ** 0.5)
        b1 = 0.1 * jax.random.normal(ks[3], (Cmid,), jnp.float32)
        w2 = jax.random.normal(ks[4], (Cout, Cmid), jnp.float32) / (Cmid ** 0.5)
        gamma = 1.0 + 0.1 * jax.random.normal(ks[5], (Cout,), jnp.float32)
        beta = 0.1 * jax.random.normal(ks[6], (Cout,), jnp.float32)
        return x, se, w1, b1, w2, gamma, beta

    configs = [
        # Small config, fused path: exercises multi-batch + multi-tile accumulation and
        # the dynamic store into the resident output.
        dict(N=2, Cse=8, Cmid=32, Cout=16, H=16, W=16, hw_tile=128,
             force_two_pass=False, tol=5e-3),
        # Same small shapes, forced two-pass fallback (bf16 y + per-batch partial stats).
        dict(N=2, Cse=8, Cmid=32, Cout=16, H=16, W=16, hw_tile=128,
             force_two_pass=True, tol=1e-2),
        # Real module shapes: Conv2d(50->1200), Conv2d(1200->200), 14x14 feature map.
        dict(N=1, Cse=50, Cmid=1200, Cout=200, H=14, W=14, hw_tile=None,
             force_two_pass=False, tol=5e-3),
    ]

    key = jax.random.PRNGKey(0)
    for cfg in configs:
        key, sub = jax.random.split(key)
        x, se, w1, b1, w2, gamma, beta = make_inputs(
            sub, cfg["N"], cfg["Cse"], cfg["Cmid"], cfg["Cout"], cfg["H"], cfg["W"])

        out = fused_se_conv_bn(x, se, w1, b1, w2, gamma, beta, eps=1e-3,
                               hw_tile=cfg["hw_tile"],
                               force_two_pass=cfg["force_two_pass"])
        out = jax.block_until_ready(out)

        ref = _reference(x, se, w1, b1, w2, gamma, beta, eps=1e-3,
                         y_bf16=cfg["force_two_pass"])
        assert out.shape == (cfg["N"], cfg["Cout"], cfg["H"], cfg["W"])
        max_err = float(jnp.max(jnp.abs(out - ref)))
        assert jnp.allclose(out, ref, atol=cfg["tol"], rtol=cfg["tol"]), (
            f"mismatch vs reference for config {cfg}: max abs err {max_err}")

    print("KERNEL_OK")
</pallas_src>

<mosaic_0001>
module attributes {stable_mosaic.version = 11 : i64} {
  func.func @_fused_kernel(%arg0: i32, %arg1: i32, %arg2: memref<1x8x1xf32, #tpu.memory_space<vmem>>, %arg3: memref<8x32xf32, #tpu.memory_space<vmem>>, %arg4: memref<1x32xf32, #tpu.memory_space<vmem>>, %arg5: memref<1x32x128xf32, #tpu.memory_space<vmem>>, %arg6: memref<16x32xbf16, #tpu.memory_space<vmem>>, %arg7: memref<16x1xf32, #tpu.memory_space<vmem>>, %arg8: memref<16x1xf32, #tpu.memory_space<vmem>>, %arg9: memref<2x16x256xf32, #tpu.memory_space<vmem>>, %arg10: memref<16x32xbf16, #tpu.memory_space<vmem>>, %arg11: memref<16x1xf32, #tpu.memory_space<vmem>>, %arg12: memref<16x1xf32, #tpu.memory_space<vmem>>) attributes {dimension_semantics = [#tpu.dimension_semantics<arbitrary>, #tpu.dimension_semantics<arbitrary>], iteration_bounds = array<i64: 2, 2>, scalar_prefetch = 0 : i64, scratch_operands = 3 : i64, tpu.core_type = #tpu.core_type<tc>, window_params = [{transform_indices = @transform_0, window_bounds = array<i64: 1, 8, 1>}, {pipeline_mode = #tpu.pipeline_mode<synchronous>, transform_indices = @transform_1, window_bounds = array<i64: 8, 32>}, {pipeline_mode = #tpu.pipeline_mode<synchronous>, transform_indices = @transform_2, window_bounds = array<i64: 1, 32>}, {transform_indices = @transform_3, window_bounds = array<i64: 1, 32, 128>}, {pipeline_mode = #tpu.pipeline_mode<synchronous>, transform_indices = @transform_4, window_bounds = array<i64: 16, 32>}, {pipeline_mode = #tpu.pipeline_mode<synchronous>, transform_indices = @transform_5, window_bounds = array<i64: 16, 1>}, {pipeline_mode = #tpu.pipeline_mode<synchronous>, transform_indices = @transform_6, window_bounds = array<i64: 16, 1>}, {pipeline_mode = #tpu.pipeline_mode<synchronous>, transform_indices = @transform_7, window_bounds = array<i64: 2, 16, 256>}]} {
    %c0_i32 = arith.constant 0 : i32
    %0 = arith.cmpi eq, %arg0, %c0_i32 : i32
    %c0_i32_0 = arith.constant 0 : i32
    %1 = arith.cmpi eq, %arg1, %c0_i32_0 : i32
    %2 = arith.andi %0, %1 : i1
    %3 = arith.extui %2 : i1 to i32
    %c0_i32_1 = arith.constant 0 : i32
    %4 = arith.cmpi ne, %3, %c0_i32_1 : i32
    scf.if %4 {
      %cst_21 = arith.constant 0.000000e+00 : f32
      %36 = vector.broadcast %cst_21 : f32 to vector<16x1xf32>
      %c0_22 = arith.constant 0 : index
      %c0_23 = arith.constant 0 : index
      %37 = vector.load %arg11[%c0_22, %c0_23] : memref<16x1xf32, #tpu.memory_space<vmem>>, vector<16x1xf32>
      tpu.vector_store %arg11[%c0_22, %c0_23], %36 {strides = array<i32>} : memref<16x1xf32, #tpu.memory_space<vmem>>, vector<16x1xf32>,
      %cst_24 = arith.constant 0.000000e+00 : f32
      %38 = vector.broadcast %cst_24 : f32 to vector<16x1xf32>
      %c0_25 = arith.constant 0 : index
      %c0_26 = arith.constant 0 : index
      %39 = vector.load %arg12[%c0_25, %c0_26] : memref<16x1xf32, #tpu.memory_space<vmem>>, vector<16x1xf32>
      tpu.vector_store %arg12[%c0_25, %c0_26], %38 {strides = array<i32>} : memref<16x1xf32, #tpu.memory_space<vmem>>, vector<16x1xf32>,
    } else {
    }
    %c0_i32_2 = arith.constant 0 : i32
    %5 = arith.cmpi eq, %arg1, %c0_i32_2 : i32
    %6 = arith.extui %5 : i1 to i32
    %c0_i32_3 = arith.constant 0 : i32
    %7 = arith.cmpi ne, %6, %c0_i32_3 : i32
    scf.if %7 {
      %c0_21 = arith.constant 0 : index
      %c0_22 = arith.constant 0 : index
      %36 = vector.load %arg3[%c0_21, %c0_22] : memref<8x32xf32, #tpu.memory_space<vmem>>, vector<8x32xf32>
      %c0_23 = arith.constant 0 : index
      %c0_24 = arith.constant 0 : index
      %c0_25 = arith.constant 0 : index
      %37 = vector.load %arg2[%c0_23, %c0_24, %c0_25] : memref<1x8x1xf32, #tpu.memory_space<vmem>>, vector<1x8x1xf32>
      %38 = vector.shape_cast %37 : vector<1x8x1xf32> to vector<8x1xf32>
      %39 = vector.broadcast %38 : vector<8x1xf32> to vector<8x32xf32>
      %40 = arith.mulf %36, %39 : vector<8x32xf32>
      %cst_26 = arith.constant dense<0.000000e+00> : vector<32xf32>
      %41 = vector.multi_reduction <add>, %40, %cst_26 [0] : vector<8x32xf32> to vector<32xf32>
      %42 = vector.shape_cast %41 : vector<32xf32> to vector<1x32xf32>
      %c0_27 = arith.constant 0 : index
      %c0_28 = arith.constant 0 : index
      %43 = vector.load %arg4[%c0_27, %c0_28] : memref<1x32xf32, #tpu.memory_space<vmem>>, vector<1x32xf32>
      %44 = arith.addf %42, %43 : vector<1x32xf32>
      %45 = arith.negf %44 : vector<1x32xf32>
      %46 = math.exp %45 : vector<1x32xf32>
      %cst_29 = arith.constant 1.000000e+00 : f32
      %47 = vector.broadcast %cst_29 : f32 to vector<1x32xf32>
      %48 = arith.addf %47, %46 : vector<1x32xf32>
      %49 = arith.divf %47, %48 : vector<1x32xf32>
      %c0_30 = arith.constant 0 : index
      %c0_31 = arith.constant 0 : index
      %50 = vector.load %arg6[%c0_30, %c0_31] : memref<16x32xbf16, #tpu.memory_space<vmem>>, vector<16x32xbf16>
      %51 = arith.extf %50 : vector<16x32xbf16> to vector<16x32xf32>
      %52 = vector.broadcast %49 : vector<1x32xf32> to vector<16x32xf32>
      %53 = arith.mulf %51, %52 : vector<16x32xf32>
      %54 = arith.truncf %53 : vector<16x32xf32> to vector<16x32xbf16>
      %c0_32 = arith.constant 0 : index
      %c0_33 = arith.constant 0 : index
      %55 = vector.load %arg10[%c0_32, %c0_33] : memref<16x32xbf16, #tpu.memory_space<vmem>>, vector<16x32xbf16>
      tpu.vector_store %arg10[%c0_32, %c0_33], %54 {strides = array<i32>} : memref<16x32xbf16, #tpu.memory_space<vmem>>, vector<16x32xbf16>,
    } else {
    }
    %c0 = arith.constant 0 : index
    %c0_4 = arith.constant 0 : index
    %8 = vector.load %arg10[%c0, %c0_4] : memref<16x32xbf16, #tpu.memory_space<vmem>>, vector<16x32xbf16>
    %c0_5 = arith.constant 0 : index
    %c0_6 = arith.constant 0 : index
    %c0_7 = arith.constant 0 : index
    %9 = vector.load %arg5[%c0_5, %c0_6, %c0_7] : memref<1x32x128xf32, #tpu.memory_space<vmem>>, vector<1x32x128xf32>
    %10 = vector.shape_cast %9 : vector<1x32x128xf32> to vector<32x128xf32>
    %11 = arith.truncf %10 : vector<32x128xf32> to vector<32x128xbf16>
    %cst = arith.constant dense<0.000000e+00> : vector<16x128xf32>
    %12 = tpu.matmul %8, %11, %cst {dimension_numbers = #tpu.dot_dimension_numbers<[1], [0], [0], [1], [0, 0, 1, 1], [], []>} : vector<16x32xbf16>, vector<32x128xbf16>, vector<16x128xf32> -> vector<16x128xf32>
    %c128_i32 = arith.constant 128 : i32
    %13 = arith.muli %arg1, %c128_i32 : i32
    %14 = tpu.assume_multiple %13, 128 : i32
    %15 = arith.index_cast %arg0 : i32 to index
    %c0_8 = arith.constant 0 : index
    %16 = arith.index_cast %14 : i32 to index
    %17 = vector.load %arg9[%15, %c0_8, %16] : memref<2x16x256xf32, #tpu.memory_space<vmem>>, vector<1x16x128xf32>
    %18 = vector.shape_cast %17 : vector<1x16x128xf32> to vector<16x128xf32>
    %19 = vector.shape_cast %12 : vector<16x128xf32> to vector<1x16x128xf32>
    tpu.vector_store %arg9[%15, %c0_8, %16], %19 {strides = array<i32>} : memref<2x16x256xf32, #tpu.memory_space<vmem>>, vector<1x16x128xf32>,
    %c0_9 = arith.constant 0 : index
    %c0_10 = arith.constant 0 : index
    %20 = vector.load %arg11[%c0_9, %c0_10] : memref<16x1xf32, #tpu.memory_space<vmem>>, vector<16x1xf32>
    %cst_11 = arith.constant dense<0.000000e+00> : vector<16xf32>
    %21 = vector.multi_reduction <add>, %12, %cst_11 [1] : vector<16x128xf32> to vector<16xf32>
    %22 = vector.shape_cast %21 : vector<16xf32> to vector<16x1xf32>
    %23 = arith.addf %20, %22 : vector<16x1xf32>
    %c0_12 = arith.constant 0 : index
    %c0_13 = arith.constant 0 : index
    %24 = vector.load %arg11[%c0_12, %c0_13] : memref<16x1xf32, #tpu.memory_space<vmem>>, vector<16x1xf32>
    tpu.vector_store %arg11[%c0_12, %c0_13], %23 {strides = array<i32>} : memref<16x1xf32, #tpu.memory_space<vmem>>, vector<16x1xf32>,
    %c0_14 = arith.constant 0 : index
    %c0_15 = arith.constant 0 : index
    %25 = vector.load %arg12[%c0_14, %c0_15] : memref<16x1xf32, #tpu.memory_space<vmem>>, vector<16x1xf32>
    %26 = arith.mulf %12, %12 : vector<16x128xf32>
    %cst_16 = arith.constant dense<0.000000e+00> : vector<16xf32>
    %27 = vector.multi_reduction <add>, %26, %cst_16 [1] : vector<16x128xf32> to vector<16xf32>
    %28 = vector.shape_cast %27 : vector<16xf32> to vector<16x1xf32>
    %29 = arith.addf %25, %28 : vector<16x1xf32>
    %c0_17 = arith.constant 0 : index
    %c0_18 = arith.constant 0 : index
    %30 = vector.load %arg12[%c0_17, %c0_18] : memref<16x1xf32, #tpu.memory_space<vmem>>, vector<16x1xf32>
    tpu.vector_store %arg12[%c0_17, %c0_18], %29 {strides = array<i32>} : memref<16x1xf32, #tpu.memory_space<vmem>>, vector<16x1xf32>,
    %c1_i32 = arith.constant 1 : i32
    %31 = arith.cmpi eq, %arg0, %c1_i32 : i32
    %c1_i32_19 = arith.constant 1 : i32
    %32 = arith.cmpi eq, %arg1, %c1_i32_19 : i32
    %33 = arith.andi %31, %32 : i1
    %34 = arith.extui %33 : i1 to i32
    %c0_i32_20 = arith.constant 0 : i32
    %35 = arith.cmpi ne, %34, %c0_i32_20 : i32
    scf.if %35 {
      %c0_21 = arith.constant 0 : index
      %c0_22 = arith.constant 0 : index
      %36 = vector.load %arg11[%c0_21, %c0_22] : memref<16x1xf32, #tpu.memory_space<vmem>>, vector<16x1xf32>
      %cst_23 = arith.constant 0.001953125 : f32
      %37 = vector.broadcast %cst_23 : f32 to vector<16x1xf32>
      %38 = arith.mulf %36, %37 : vector<16x1xf32>
      %c0_24 = arith.constant 0 : index
      %c0_25 = arith.constant 0 : index
      %39 = vector.load %arg12[%c0_24, %c0_25] : memref<16x1xf32, #tpu.memory_space<vmem>>, vector<16x1xf32>
      %cst_26 = arith.constant 0.001953125 : f32
      %40 = vector.broadcast %cst_26 : f32 to vector<16x1xf32>
      %41 = arith.mulf %39, %40 : vector<16x1xf32>
      %42 = arith.mulf %38, %38 : vector<16x1xf32>
      %43 = arith.subf %41, %42 : vector<16x1xf32>
      %cst_27 = arith.constant 0.000000e+00 : f32
      %44 = vector.broadcast %cst_27 : f32 to vector<16x1xf32>
      %45 = arith.maximumf %43, %44 : vector<16x1xf32>
      %cst_28 = arith.constant 1.000000e-03 : f32
      %46 = vector.broadcast %cst_28 : f32 to vector<16x1xf32>
      %47 = arith.addf %45, %46 : vector<16x1xf32>
      %48 = math.rsqrt %47 : vector<16x1xf32>
      %c0_29 = arith.constant 0 : index
      %c0_30 = arith.constant 0 : index
      %49 = vector.load %arg7[%c0_29, %c0_30] : memref<16x1xf32, #tpu.memory_space<vmem>>, vector<16x1xf32>
      %50 = arith.mulf %49, %48 : vector<16x1xf32>
      %c0_31 = arith.constant 0 : index
      %c0_32 = arith.constant 0 : index
      %51 = vector.load %arg8[%c0_31, %c0_32] : memref<16x1xf32, #tpu.memory_space<vmem>>, vector<16x1xf32>
      %52 = arith.mulf %38, %50 : vector<16x1xf32>
      %53 = arith.subf %51, %52 : vector<16x1xf32>
      %c0_33 = arith.constant 0 : index
      %c0_34 = arith.constant 0 : index
      %c0_35 = arith.constant 0 : index
      %54 = vector.load %arg9[%c0_33, %c0_34, %c0_35] : memref<2x16x256xf32, #tpu.memory_space<vmem>>, vector<2x16x256xf32>
      %55 = vector.shape_cast %50 : vector<16x1xf32> to vector<1x16x1xf32>
      %56 = vector.broadcast %55 : vector<1x16x1xf32> to vector<2x16x256xf32>
      %57 = arith.mulf %54, %56 : vector<2x16x256xf32>
      %58 = vector.shape_cast %53 : vector<16x1xf32> to vector<1x16x1xf32>
      %59 = vector.broadcast %58 : vector<1x16x1xf32> to vector<2x16x256xf32>
      %60 = arith.addf %57, %59 : vector<2x16x256xf32>
      %c0_36 = arith.constant 0 : index
      %c0_37 = arith.constant 0 : index
      %c0_38 = arith.constant 0 : index
      %61 = vector.load %arg9[%c0_36, %c0_37, %c0_38] : memref<2x16x256xf32, #tpu.memory_space<vmem>>, vector<2x16x256xf32>
      tpu.vector_store %arg9[%c0_36, %c0_37, %c0_38], %60 {strides = array<i32>} : memref<2x16x256xf32, #tpu.memory_space<vmem>>, vector<2x16x256xf32>,
    } else {
    }
    return
  }
  func.func @transform_0(%arg0: i32, %arg1: i32) -> (i32, i32, i32) {
    %c0_i32 = arith.constant 0 : i32
    %c0_i32_0 = arith.constant 0 : i32
    %c0_i32_1 = arith.constant 0 : i32
    return %arg0, %c0_i32, %c0_i32_0 : i32, i32, i32
  }
  func.func @transform_1(%arg0: i32, %arg1: i32) -> (i32, i32) {
    %c0_i32 = arith.constant 0 : i32
    %c0_i32_0 = arith.constant 0 : i32
    %c0_i32_1 = arith.constant 0 : i32
    return %c0_i32, %c0_i32_0 : i32, i32
  }
  func.func @transform_2(%arg0: i32, %arg1: i32) -> (i32, i32) {
    %c0_i32 = arith.constant 0 : i32
    %c0_i32_0 = arith.constant 0 : i32
    %c0_i32_1 = arith.constant 0 : i32
    return %c0_i32, %c0_i32_0 : i32, i32
  }
  func.func @transform_3(%arg0: i32, %arg1: i32) -> (i32, i32, i32) {
    %c0_i32 = arith.constant 0 : i32
    %c0_i32_0 = arith.constant 0 : i32
    return %arg0, %c0_i32, %arg1 : i32, i32, i32
  }
  func.func @transform_4(%arg0: i32, %arg1: i32) -> (i32, i32) {
    %c0_i32 = arith.constant 0 : i32
    %c0_i32_0 = arith.constant 0 : i32
    %c0_i32_1 = arith.constant 0 : i32
    return %c0_i32, %c0_i32_0 : i32, i32
  }
  func.func @transform_5(%arg0: i32, %arg1: i32) -> (i32, i32) {
    %c0_i32 = arith.constant 0 : i32
    %c0_i32_0 = arith.constant 0 : i32
    %c0_i32_1 = arith.constant 0 : i32
    return %c0_i32, %c0_i32_0 : i32, i32
  }
  func.func @transform_6(%arg0: i32, %arg1: i32) -> (i32, i32) {
    %c0_i32 = arith.constant 0 : i32
    %c0_i32_0 = arith.constant 0 : i32
    %c0_i32_1 = arith.constant 0 : i32
    return %c0_i32, %c0_i32_0 : i32, i32
  }
  func.func @transform_7(%arg0: i32, %arg1: i32) -> (i32, i32, i32) {
    %c0_i32 = arith.constant 0 : i32
    %c0_i32_0 = arith.constant 0 : i32
    %c0_i32_1 = arith.constant 0 : i32
    %c0_i32_2 = arith.constant 0 : i32
    return %c0_i32, %c0_i32_0, %c0_i32_1 : i32, i32, i32
  }
}

</mosaic_0001>

<llo_original>
// kernel: fused_se_conv_bn.1
$region0: #{fused_se_conv_bn.1}
  #allocation0 [shape = 'u32[]', space=smem, size = 0x4, offset = 0x4, fixed_abs, tag = 'smem constant byte address 0x4 - core index']
  #allocation1 [shape = 'u32[144,128]{1,0:T(1,128)}', space=vmem, size = 0x12000, scoped, tag = 'internal scratch']
  #allocation2 [shape = 'bf16[16,32]{1,0:T(16,128)(2,1)}', space=vmem, size = 0x1000, scoped, tag = 'scratch operand']
  #allocation3 [shape = 'f32[16,1]{1,0:T(8,128)}', space=vmem, size = 0x2000, scoped, tag = 'scratch operand']
  #allocation4 [shape = 'f32[16,1]{1,0:T(8,128)}', space=vmem, size = 0x2000, scoped, tag = 'scratch operand']
  %s0 = inlined_call_operand.vmem [shape: f32[2,8,1], index: 0, kind: input, shape index: {}]
  %s1 = inlined_call_operand.vmem [shape: f32[8,32], index: 1, kind: input, shape index: {}]
  %s2 = inlined_call_operand.vmem [shape: f32[1,32], index: 2, kind: input, shape index: {}]
  %s3 = inlined_call_operand.vmem [shape: f32[2,32,256], index: 3, kind: input, shape index: {}]
  %s4 = inlined_call_operand.vmem [shape: bf16[16,32], index: 4, kind: input, shape index: {}]
  %s5 = inlined_call_operand.vmem [shape: f32[16,1], index: 5, kind: input, shape index: {}]
  %s6 = inlined_call_operand.vmem [shape: f32[16,1], index: 6, kind: input, shape index: {}]
  %s7 = inlined_call_operand.vmem [shape: f32[2,16,256], index: 7, kind: output, shape index: {}]
  %s8 = sld [smem:[#allocation0]]
  $region111: #{fused_se_conv_bn.1} parent=0
    _
  %s10 = ssub.s32 1, %s8
  %s11 = scalar_select 0, %s10, %s8
  $region1: #{fused_se_conv_bn.1} parent=0
    #allocation5 [shape = 'u8[32768]{0}', space=vmem, size = 0x8000, scoped, tag = 'input window, operand 3']
    loop: start=0, step=1, limit=6
    $region2: #{fused_se_conv_bn.1} parent=1 // loop_pre_header
      _
    $region3: #{fused_se_conv_bn.1} parent=1 // loop_header
      %s13 = sphi 0, %s17
      %p14 = scmp.ge.s32.totalorder %s13, 6
      %s20 = sphi 0, %s32
      %s21 = sphi 0, %s28
      %s22 = sphi 0, %s20
      %s23 = sphi 0, %s21
      %s24 = sphi 0, %s22
      %s25 = sphi 0, %s23
      %s35 = sphi 0, %s37
      %s38 = sphi 0, %s35
      %s39 = sphi 0, %s38
      %s55 = sphi 0, %s39
      %s59 = sphi 0, %s59
      %s61 = sphi 0, %s59
      %s62 = sphi 0, %s61
      %s76 = sphi 0, %s62
      %s80 = sphi 0, %s80
      %s82 = sphi 0, %s80
      %s83 = sphi 0, %s82
      %s97 = sphi 0, %s83
      %s105 = sphi 0, %s107
      %s108 = sphi 0, %s105
      %s109 = sphi 0, %s108
      %s125 = sphi 0, %s109
      %s129 = sphi 0, %s129
      %s131 = sphi 0, %s129
      %s132 = sphi 0, %s131
      %s146 = sphi 0, %s132
      %s150 = sphi 0, %s150
      %s152 = sphi 0, %s150
      %s153 = sphi 0, %s152
      %s167 = sphi 0, %s153
      %s171 = sphi 0, %s171
      %s173 = sphi 0, %s171
      %s174 = sphi 0, %s173
      %s188 = sphi 0, %s174
      %s192 = sphi 0, %s192
      %s194 = sphi 0, %s192
      %s195 = sphi 0, %s194
      %s209 = sphi 0, %s195
    $region4: #{fused_se_conv_bn.1} parent=1 // loop_header_branch
      %16 = sbr.rel (%p14) target = $region8
    $region5: #{fused_se_conv_bn.1} parent=1 // loop_body
      %s18 = ssub.s32 %s13, 1
      %s19 = ssub.s32 %s13, 2
      %s26 = sadd.s32 1, %s21
      %p27 = scmp.ge.s32.totalorder %s26, 2
      %s28 = scalar_select %p27, 0, %s26
      %s29 = sadd.s32 1, %s20
      %s30 = scalar_select %p27, %s29, %s20
      %p31 = scmp.ge.s32.totalorder %s30, 2
      %s32 = scalar_select %p31, 0, %s30
      %s33 = ssub.s32 %s20, %s32
      %p34 = scmp.eq.s32.totalorder %s33, 0
      %s36 = sadd.s32 %s35, 1
      %s37 = scalar_select %p34, %s35, %s36
      %p40 = pneg %p34
      %p41 = scmp.eq.s32.totalorder %s13, 3
      %p42 = por %p40, %p41
      %p43 = scmp.ne.s32.totalorder %s35, %s38
      %p44 = scmp.eq.s32.totalorder %s13, 0
      %p45 = por %p43, %p44
      %p46 = scmp.ne.s32.totalorder %s35, %s38
      %p47 = scmp.eq.s32.totalorder %s18, 3
      %p48 = por %p46, %p47
      %p49 = scmp.ne.s32.totalorder %s38, %s39
      %p50 = scmp.eq.s32.totalorder %s18, 0
      %p51 = por %p49, %p50
      %p52 = scmp.ne.s32.totalorder %s38, %s39
      %p53 = scmp.eq.s32.totalorder %s19, 3
      %p54 = por %p52, %p53
      %p56 = scmp.ne.s32.totalorder %s39, %s55
      %p57 = scmp.eq.s32.totalorder %s19, 0
      %p58 = por %p56, %p57
      %s60 = sadd.s32 %s59, 1
      %p63 = scmp.eq.s32.totalorder %s13, 3
      %p64 = scmp.ne.s32.totalorder %s59, %s61
      %p65 = scmp.eq.s32.totalorder %s13, 0
      %p66 = por %p64, %p65
      %p67 = scmp.ne.s32.totalorder %s59, %s61
      %p68 = scmp.eq.s32.totalorder %s18, 3
      %p69 = por %p67, %p68
      %p70 = scmp.ne.s32.totalorder %s61, %s62
      %p71 = scmp.eq.s32.totalorder %s18, 0
      %p72 = por %p70, %p71
      %p73 = scmp.ne.s32.totalorder %s61, %s62
      %p74 = scmp.eq.s32.totalorder %s19, 3
      %p75 = por %p73, %p74
      %p77 = scmp.ne.s32.totalorder %s62, %s76
      %p78 = scmp.eq.s32.totalorder %s19, 0
      %p79 = por %p77, %p78
      %s81 = sadd.s32 %s80, 1
      %p84 = scmp.eq.s32.totalorder %s13, 3
      %p85 = scmp.ne.s32.totalorder %s80, %s82
      %p86 = scmp.eq.s32.totalorder %s13, 0
      %p87 = por %p85, %p86
      %p88 = scmp.ne.s32.totalorder %s80, %s82
      %p89 = scmp.eq.s32.totalorder %s18, 3
      %p90 = por %p88, %p89
      %p91 = scmp.ne.s32.totalorder %s82, %s83
      %p92 = scmp.eq.s32.totalorder %s18, 0
      %p93 = por %p91, %p92
      %p94 = scmp.ne.s32.totalorder %s82, %s83
      %p95 = scmp.eq.s32.totalorder %s19, 3
      %p96 = por %p94, %p95
      %p98 = scmp.ne.s32.totalorder %s83, %s97
      %p99 = scmp.eq.s32.totalorder %s19, 0
      %p100 = por %p98, %p99
      %s101 = ssub.s32 %s20, %s32
      %s102 = ssub.s32 %s21, %s28
      %s103 = sor.u32 %s101, %s102
      %p104 = scmp.eq.s32.totalorder %s103, 0
      %s106 = sadd.s32 %s105, 1
      %s107 = scalar_select %p104, %s105, %s106
      %p110 = pneg %p104
      %p111 = scmp.eq.s32.totalorder %s13, 3
      %p112 = por %p110, %p111
      %p113 = scmp.ne.s32.totalorder %s105, %s108
      %p114 = scmp.eq.s32.totalorder %s13, 0
      %p115 = por %p113, %p114
      %p116 = scmp.ne.s32.totalorder %s105, %s108
      %p117 = scmp.eq.s32.totalorder %s18, 3
      %p118 = por %p116, %p117
      %p119 = scmp.ne.s32.totalorder %s108, %s109
      %p120 = scmp.eq.s32.totalorder %s18, 0
      %p121 = por %p119, %p120
      %p122 = scmp.ne.s32.totalorder %s108, %s109
      %p123 = scmp.eq.s32.totalorder %s19, 3
      %p124 = por %p122, %p123
      %p126 = scmp.ne.s32.totalorder %s109, %s125
      %p127 = scmp.eq.s32.totalorder %s19, 0
      %p128 = por %p126, %p127
      %s130 = sadd.s32 %s129, 1
      %p133 = scmp.eq.s32.totalorder %s13, 3
      %p134 = scmp.ne.s32.totalorder %s129, %s131
      %p135 = scmp.eq.s32.totalorder %s13, 0
      %p136 = por %p134, %p135
      %p137 = scmp.ne.s32.totalorder %s129, %s131
      %p138 = scmp.eq.s32.totalorder %s18, 3
      %p139 = por %p137, %p138
      %p140 = scmp.ne.s32.totalorder %s131, %s132
      %p141 = scmp.eq.s32.totalorder %s18, 0
      %p142 = por %p140, %p141
      %p143 = scmp.ne.s32.totalorder %s131, %s132
      %p144 = scmp.eq.s32.totalorder %s19, 3
      %p145 = por %p143, %p144
      %p147 = scmp.ne.s32.totalorder %s132, %s146
      %p148 = scmp.eq.s32.totalorder %s19, 0
      %p149 = por %p147, %p148
      %s151 = sadd.s32 %s150, 1
      %p154 = scmp.eq.s32.totalorder %s13, 3
      %p155 = scmp.ne.s32.totalorder %s150, %s152
      %p156 = scmp.eq.s32.totalorder %s13, 0
      %p157 = por %p155, %p156
      %p158 = scmp.ne.s32.totalorder %s150, %s152
      %p159 = scmp.eq.s32.totalorder %s18, 3
      %p160 = por %p158, %p159
      %p161 = scmp.ne.s32.totalorder %s152, %s153
      %p162 = scmp.eq.s32.totalorder %s18, 0
      %p163 = por %p161, %p162
      %p164 = scmp.ne.s32.totalorder %s152, %s153
      %p165 = scmp.eq.s32.totalorder %s19, 3
      %p166 = por %p164, %p165
      %p168 = scmp.ne.s32.totalorder %s153, %s167
      %p169 = scmp.eq.s32.totalorder %s19, 0
      %p170 = por %p168, %p169
      %s172 = sadd.s32 %s171, 1
      %p175 = scmp.eq.s32.totalorder %s13, 3
      %p176 = scmp.ne.s32.totalorder %s171, %s173
      %p177 = scmp.eq.s32.totalorder %s13, 0
      %p178 = por %p176, %p177
      %p179 = scmp.ne.s32.totalorder %s171, %s173
      %p180 = scmp.eq.s32.totalorder %s18, 3
      %p181 = por %p179, %p180
      %p182 = scmp.ne.s32.totalorder %s173, %s174
      %p183 = scmp.eq.s32.totalorder %s18, 0
      %p184 = por %p182, %p183
      %p185 = scmp.ne.s32.totalorder %s173, %s174
      %p186 = scmp.eq.s32.totalorder %s19, 3
      %p187 = por %p185, %p186
      %p189 = scmp.ne.s32.totalorder %s174, %s188
      %p190 = scmp.eq.s32.totalorder %s19, 0
      %p191 = por %p189, %p190
      %s193 = sadd.s32 %s192, 1
      %p196 = scmp.eq.s32.totalorder %s13, 3
      %p197 = scmp.ne.s32.totalorder %s192, %s194
      %p198 = scmp.eq.s32.totalorder %s13, 0
      %p199 = por %p197, %p198
      %p200 = scmp.ne.s32.totalorder %s192, %s194
      %p201 = scmp.eq.s32.totalorder %s18, 3
      %p202 = por %p200, %p201
      %p203 = scmp.ne.s32.totalorder %s194, %s195
      %p204 = scmp.eq.s32.totalorder %s18, 0
      %p205 = por %p203, %p204
      %p206 = scmp.ne.s32.totalorder %s194, %s195
      %p207 = scmp.eq.s32.totalorder %s19, 3
      %p208 = por %p206, %p207
      %p210 = scmp.ne.s32.totalorder %s195, %s209
      %p211 = scmp.eq.s32.totalorder %s19, 0
      %p212 = por %p210, %p211
      %p213 = scmp.le.s32.totalorder 1, %s13
      %p214 = scmp.lt.s32.totalorder %s13, 5
      %p215 = pnand %p213, %p214
      %p216 = pneg %p215
      // Predicated region
      $region9: #{fused_se_conv_bn.1} parent=5 // pred_check
        _
      $region10: #{fused_se_conv_bn.1} parent=5 // pred_check_branch
        %218 = sbr.rel (%p215) target = $region12
      $region11: #{fused_se_conv_bn.1} parent=5 // pred_region
        %s219 = ssub.s32 %s13, 1
        // Predicated region
        $region13: #{fused_se_conv_bn.1} parent=11 // pred_check
          %p220 = pneg %p72
        $region14: #{fused_se_conv_bn.1} parent=11 // pred_check_branch
          %222 = sbr.rel (%p220) target = $region16
        $region15: #{fused_se_conv_bn.1} parent=11 // pred_region
          _
        $region16: #{fused_se_conv_bn.1} parent=11 // pred_fallthru
          _
        // Predicated region
        $region17: #{fused_se_conv_bn.1} parent=11 // pred_check
          %p223 = pneg %p93
        $region18: #{fused_se_conv_bn.1} parent=11 // pred_check_branch
          %225 = sbr.rel (%p223) target = $region20
        $region19: #{fused_se_conv_bn.1} parent=11 // pred_region
          _
        $region20: #{fused_se_conv_bn.1} parent=11 // pred_fallthru
          _
        // Predicated region
        $region21: #{fused_se_conv_bn.1} parent=11 // pred_check
          %p226 = pneg %p142
        $region22: #{fused_se_conv_bn.1} parent=11 // pred_check_branch
          %228 = sbr.rel (%p226) target = $region24
        $region23: #{fused_se_conv_bn.1} parent=11 // pred_region
          _
        $region24: #{fused_se_conv_bn.1} parent=11 // pred_fallthru
          _
        // Predicated region
        $region25: #{fused_se_conv_bn.1} parent=11 // pred_check
          %p229 = pneg %p163
        $region26: #{fused_se_conv_bn.1} parent=11 // pred_check_branch
          %231 = sbr.rel (%p229) target = $region28
        $region27: #{fused_se_conv_bn.1} parent=11 // pred_region
          _
        $region28: #{fused_se_conv_bn.1} parent=11 // pred_fallthru
          _
        // Predicated region
        $region29: #{fused_se_conv_bn.1} parent=11 // pred_check
          %p232 = pneg %p184
        $region30: #{fused_se_conv_bn.1} parent=11 // pred_check_branch
          %234 = sbr.rel (%p232) target = $region32
        $region31: #{fused_se_conv_bn.1} parent=11 // pred_region
          _
        $region32: #{fused_se_conv_bn.1} parent=11 // pred_fallthru
          _
      $region12: #{fused_se_conv_bn.1} parent=5 // pred_fallthru
        _
      %p235 = scmp.lt.s32.totalorder %s13, 4
      // Predicated region
      $region33: #{fused_se_conv_bn.1} parent=5 // pred_check
        %p236 = pneg %p235
      $region34: #{fused_se_conv_bn.1} parent=5 // pred_check_branch
        %238 = sbr.rel (%p236) target = $region36
      $region35: #{fused_se_conv_bn.1} parent=5 // pred_region
        // Predicated region
        $region37: #{fused_se_conv_bn.1} parent=35 // pred_check
          %p239 = pneg %p45
        $region38: #{fused_se_conv_bn.1} parent=35 // pred_check_branch
          %241 = sbr.rel (%p239) target = $region40
        $region39: #{fused_se_conv_bn.1} parent=35 // pred_region
          %p242 = scmp.lt.s32.totalorder %s20, 1
          %s243 = scalar_select %p242, %s20, 1
          %s244 = smul.addr %s243, 8
          %s245 = scalar_lea.vmem %s0, %s244
        $region40: #{fused_se_conv_bn.1} parent=35 // pred_fallthru
          _
        // Predicated region
        $region41: #{fused_se_conv_bn.1} parent=35 // pred_check
          %p246 = pneg %p115
        $region42: #{fused_se_conv_bn.1} parent=35 // pred_check_branch
          %248 = sbr.rel (%p246) target = $region44
        $region43: #{fused_se_conv_bn.1} parent=35 // pred_region
          %s249 = sand.u32 %s105, 1
          %s250 = sand.u32 %s105, 1
          %s251 = smul.addr %s250, 32
          %s252 = scalar_lea.vmem [#allocation5], %s251
          %s253 = smul.addr %s20, 8
          %s254 = sadd.s32 %s21, %s253
          %s255 = smul.addr %s254, 8
          %s256 = scalar_lea.vmem %s3, %s255
          // Predicated region
          $region45: #{fused_se_conv_bn.1} parent=43 // pred_check
            _
          $region46: #{fused_se_conv_bn.1} parent=43 // pred_check_branch
            %258 = sbr.rel (0) target = $region48
          $region47: #{fused_se_conv_bn.1} parent=43 // pred_region
            // Predicated region
            $region49: #{fused_se_conv_bn.1} parent=47 // pred_check
              _
            $region50: #{fused_se_conv_bn.1} parent=47 // pred_check_branch
              %260 = sbr.rel (0) target = $region52
            $region51: #{fused_se_conv_bn.1} parent=47 // pred_region
              // Predicated region
              $region64: #{fused_se_conv_bn.1} parent=51 // pred_check
                _
              $region65: #{fused_se_conv_bn.1} parent=51 // pred_check_branch
                %281 = sbr.rel (0) target = $region67
              $region66: #{fused_se_conv_bn.1} parent=51 // pred_region
                loop: start=0, step=1, limit=1
                $region68: #{fused_se_conv_bn.1} parent=66 // loop_pre_header
                  _
                $region69: #{fused_se_conv_bn.1} parent=66 // loop_header
                  %s283 = sphi 0, %s287
                  %p284 = scmp.ge.s32.totalorder %s283, 1
                  %s288 = sphi %s256, %s256
                  %s289 = sphi %s252, %s252
                $region70: #{fused_se_conv_bn.1} parent=66 // loop_header_branch
                  %286 = sbr.rel (%p284) target = $region74
                $region71: #{fused_se_conv_bn.1} parent=66 // loop_body
                  %v290 = vld [vmem:[%s288] sm:$0xff]
                  %291 = vst [vmem:[%s289] sm:$0xff] %v290
                  %v292 = vld [vmem:[%s288 + $0x10] sm:$0xff]
                  %293 = vst [vmem:[%s289 + $0x8] sm:$0xff] %v292
                  %v294 = vld [vmem:[%s288 + $0x20] sm:$0xff]
                  %295 = vst [vmem:[%s289 + $0x10] sm:$0xff] %v294
                  %v296 = vld [vmem:[%s288 + $0x30] sm:$0xff]
                  %297 = vst [vmem:[%s289 + $0x18] sm:$0xff] %v296
                $region72: #{fused_se_conv_bn.1} parent=66 // loop_footer
                  %s287 = sadd.s32 1, %s283
                $region73: #{fused_se_conv_bn.1} parent=66 // loop_footer_branch
                  %282 = sbr.rel target = $region69
                $region74: #{fused_se_conv_bn.1} parent=66 // loop_exit
                  _
              $region67: #{fused_se_conv_bn.1} parent=51 // pred_fallthru
                _
              // Predicated region
              $region75: #{fused_se_conv_bn.1} parent=51 // pred_check
                _
              $region76: #{fused_se_conv_bn.1} parent=51 // pred_check_branch
                %299 = sbr.rel target = $region78
              $region77: #{fused_se_conv_bn.1} parent=51 // pred_region
                _
              $region78: #{fused_se_conv_bn.1} parent=51 // pred_fallthru
                _
            $region52: #{fused_se_conv_bn.1} parent=47 // pred_fallthru
              _
            // Predicated region
            $region53: #{fused_se_conv_bn.1} parent=47 // pred_check
              _
            $region54: #{fused_se_conv_bn.1} parent=47 // pred_check_branch
              %262 = sbr.rel target = $region56
            $region55: #{fused_se_conv_bn.1} parent=47 // pred_region
              loop: start=0, step=1, limit=1
              $region57: #{fused_se_conv_bn.1} parent=55 // loop_pre_header
                _
              $region58: #{fused_se_conv_bn.1} parent=55 // loop_header
                %s265 = sphi 0, %s269
                %p266 = scmp.ge.s32.totalorder %s265, 1
                %s270 = sphi %s256, %s256
                %s271 = sphi %s252, %s252
              $region59: #{fused_se_conv_bn.1} parent=55 // loop_header_branch
                %268 = sbr.rel (%p266) target = $region63
              $region60: #{fused_se_conv_bn.1} parent=55 // loop_body
                %v272 = vld [vmem:[%s270] sm:$0xff]
                %273 = vst [vmem:[%s271] sm:$0xff] %v272
                %v274 = vld [vmem:[%s270 + $0x10] sm:$0xff]
                %275 = vst [vmem:[%s271 + $0x8] sm:$0xff] %v274
                %v276 = vld [vmem:[%s270 + $0x20] sm:$0xff]
                %277 = vst [vmem:[%s271 + $0x10] sm:$0xff] %v276
                %v278 = vld [vmem:[%s270 + $0x30] sm:$0xff]
                %279 = vst [vmem:[%s271 + $0x18] sm:$0xff] %v278
              $region61: #{fused_se_conv_bn.1} parent=55 // loop_footer
                %s269 = sadd.s32 1, %s265
              $region62: #{fused_se_conv_bn.1} parent=55 // loop_footer_branch
                %264 = sbr.rel target = $region58
              $region63: #{fused_se_conv_bn.1} parent=55 // loop_exit
                _
            $region56: #{fused_se_conv_bn.1} parent=47 // pred_fallthru
              _
          $region48: #{fused_se_conv_bn.1} parent=43 // pred_fallthru
            _
          %300 = vnop
        $region44: #{fused_se_conv_bn.1} parent=35 // pred_fallthru
          _
      $region36: #{fused_se_conv_bn.1} parent=5 // pred_fallthru
        _
      %p301 = scmp.le.s32.totalorder 1, %s13
      %p302 = scmp.lt.s32.totalorder %s13, 5
      %p303 = pnand %p301, %p302
      %p304 = pneg %p303
      // Predicated region
      $region79: #{fused_se_conv_bn.1} parent=5 // pred_check
        _
      $region80: #{fused_se_conv_bn.1} parent=5 // pred_check_branch
        %306 = sbr.rel (%p303) target = $region82
      $region81: #{fused_se_conv_bn.1} parent=5 // pred_region
        %s307 = ssub.s32 %s13, 1
        %s308 = sand.u32 %s108, 1
        %s309 = sand.u32 %s108, 1
        %s310 = smul.addr %s309, 32
        %s311 = scalar_lea.vmem [#allocation5], %s310
        // Predicated region
        $region83: #{fused_se_conv_bn.1} parent=81 // pred_check
          %p312 = pneg %p121
        $region84: #{fused_se_conv_bn.1} parent=81 // pred_check_branch
          %314 = sbr.rel (%p312) target = $region86
        $region85: #{fused_se_conv_bn.1} parent=81 // pred_region
          _
        $region86: #{fused_se_conv_bn.1} parent=81 // pred_fallthru
          _
        %p315 = scmp.lt.s32.totalorder %s22, 1
        %s316 = scalar_select %p315, %s22, 1
        %s317 = smul.addr %s316, 8
        %s318 = scalar_lea.vmem %s0, %s317
        %p319 = pneg %p51
        %p320 = pneg %p48
        %p321 = pneg %p72
        %p322 = pneg %p69
        %p323 = pneg %p93
        %p324 = pneg %p90
        %s325 = sand.u32 %s108, 1
        %s326 = sand.u32 %s108, 1
        %s327 = smul.addr %s326, 32
        %s328 = scalar_lea.vmem [#allocation5], %s327
        %p329 = pneg %p121
        %p330 = pneg %p118
        %p331 = pneg %p142
        %p332 = pneg %p139
        %p333 = pneg %p163
        %p334 = pneg %p160
        %p335 = pneg %p184
        %p336 = pneg %p181
        %p337 = pneg %p205
        %p338 = pneg %p202
        %p339 = scmp.lt.s32.totalorder %s22, 1
        %s340 = scalar_select %p339, %s22, 1
        %s341 = smul.addr %s340, 8
        %s342 = scalar_lea.vmem %s0, %s341
        %p344 = scmp.eq.s32.totalorder %s22, 0
        %p345 = scmp.eq.s32.totalorder %s23, 0
        %p346 = pnand %p344, %p345
        %p347 = pneg %p346
        // Predicated region
        $region87: #{fused_se_conv_bn.1} parent=81 // pred_check
          _
        $region88: #{fused_se_conv_bn.1} parent=81 // pred_check_branch
          %349 = sbr.rel (%p346) target = $region90
        $region89: #{fused_se_conv_bn.1} parent=81 // pred_region
          %vm350 = vcmask 7168
          %351 = vst.msk [vmem:[#allocation3] sm:$0xff] %vm350, 0.0
          %352 = vst.msk [vmem:[#allocation3 + $0x8] sm:$0xff] %vm350, 0.0
          %353 = vst.msk [vmem:[#allocation4] sm:$0xff] %vm350, 0.0
          %354 = vst.msk [vmem:[#allocation4 + $0x8] sm:$0xff] %vm350, 0.0
        $region90: #{fused_se_conv_bn.1} parent=81 // pred_fallthru
          _
        // Predicated region
        $region91: #{fused_se_conv_bn.1} parent=81 // pred_check
          %p355 = pneg %p345
        $region92: #{fused_se_conv_bn.1} parent=81 // pred_check_branch
          %357 = sbr.rel (%p355) target = $region94
        $region93: #{fused_se_conv_bn.1} parent=81 // pred_region
          %v358 = vld [vmem:[%s1] sm:$0xff]
          %v359 = vld [vmem:[%s342] sm:$0xff]
          %361 = vset.pattern.permute.xlu0 0
          %362 = vperm.xlu0 %361, %v359
          %v363 = vpop.permute.xlu0 %362
          %v365 = vmul.f32 %v358, %v363
          %vm366 = vcmask 261120
          %v367 = vsel %vm366, %v365, 0.0
          %v368 = vrot.slane %v367, 4
          %v369 = vadd.f32 %v367, %v368
          %v370 = vrot.slane %v369, 2
          %v371 = vadd.f32 %v369, %v370
          %v372 = vrot.slane %v371, 1
          %v373 = vadd.f32 %v371, %v372
          %v374 = vld [vmem:[%s2] sm:$0x1]
          %v375 = vadd.f32 %v373, %v374
          %v376 = vxor.u32 %v375, 2147483648
          %v377 = vmul.f32 %v376, 1.442695
          %v378 = vpow.pop %v377
          %v379 = vadd.f32 %v378, 1.0
          %v380 = vrcp.pop %v379
          %v381 = vmul.f32 1.0, %v380
          %v382 = vld [vmem:[%s4] sm:$0xf]
          %v383 = vld [vmem:[%s4 + $0x4] sm:$0xf]
          %v384 = vunpack.c.l.bf16 %v382
          %v385 = vunpack.c.l.bf16 %v383
          %v386 = vlaneseq
          %v387 = vshrl.u32 %v386, 7
          %v388 = vsub.s32 0, %v387
          %v389 = vrot.slane %v381, %v388
          %v390 = vmul.f32 %v384, %v389
          %v391 = vmul.f32 %v385, %v389
          %v392 = vpack.c.bf16 %v391, %v390
          %393 = vst.msk [vmem:[#allocation2] sm:$0xff] %vm366, %v392
        $region94: #{fused_se_conv_bn.1} parent=81 // pred_fallthru
          _
        %v394 = vld [vmem:[#allocation2] sm:$0xff]
        %v395 = vld [vmem:[%s311] sm:$0xff]
        %v396 = vld [vmem:[%s311 + $0x8] sm:$0xff]
        %v397 = vld [vmem:[%s311 + $0x10] sm:$0xff]
        %v398 = vld [vmem:[%s311 + $0x18] sm:$0xff]
        %v399 = vpack.c.bf16 %v396, %v395
        %v400 = vpack.c.bf16 %v398, %v397
        %vm401 = vcmask 261120
        %v403 = vsel %vm401, %v394, 0
        %405 = vmatprep.subr.bf16.mxu0 0
        %406 = vmatpush1.bf16.msra.mxu0 %v399
        %407 = vmatprep.subr.bf16.mxu0 0
        %408 = vmatpush1.bf16.msra.mxu0 %v400
        %409 = vmatprep.subr.bf16.mxu0 0
        %410 = vmatpush1.bf16.msra.mxu0 0
        %411 = vmatprep.subr.bf16.mxu0 0
        %412 = vmatpush1.bf16.msra.mxu0 0
        %413 = vmatprep.subr.bf16.mxu0 0
        %414 = vmatpush1.bf16.msra.mxu0 0
        %415 = vmatprep.subr.bf16.mxu0 0
        %416 = vmatpush1.bf16.msra.mxu0 0
        %417 = vmatprep.subr.bf16.mxu0 0
        %418 = vmatpush1.bf16.msra.mxu0 0
        %419 = vmatprep.subr.bf16.mxu0 0
        %420 = vmatpush1.bf16.msra.mxu0 0
        %421 = vmatprep.subr.bf16.mxu0 0
        %422 = vmatpush1.bf16.msra.mxu0 0
        %423 = vmatprep.subr.bf16.mxu0 0
        %424 = vmatpush1.bf16.msra.mxu0 0
        %425 = vmatprep.subr.bf16.mxu0 0
        %426 = vmatpush1.bf16.msra.mxu0 0
        %427 = vmatprep.subr.bf16.mxu0 0
        %428 = vmatpush1.bf16.msra.mxu0 0
        %429 = vmatprep.subr.bf16.mxu0 0
        %430 = vmatpush1.bf16.msra.mxu0 0
        %431 = vmatprep.subr.bf16.mxu0 0
        %432 = vmatpush1.bf16.msra.mxu0 0
        %433 = vmatprep.subr.bf16.mxu0 0
        %434 = vmatpush1.bf16.msra.mxu0 0
        %435 = vmatprep.subr.bf16.mxu0 0
        %436 = vmatpush1.bf16.msra.mxu0 0
        %437 = vmatprep.mubr.bf16.mxu0 0
        %438 = vmatmul.mubr.bf16.gmra.mrb[0].mxu0 %v403
        %v439 = vpop.f32.mrb[0].mxu0
        %v440 = vadd.f32 0.0, %v439
        %v441 = vpop.f32.mrb[0].mxu0
        %v442 = vpop.f32.mrb[0].mxu0
        %v443 = vadd.f32 0.0, %v442
        %v444 = vpop.f32.mrb[0].mxu0
        %445 = vdwg.mxu0
        %s446 = smul.u32 %s23, 128
        %s447 = sshra.s32 %s446, 7
        %s448 = sand.u32 %s446, 127
        %s449 = smul.u32 %s22, 4
        %s450 = sadd.s32 %s447, %s449
        %s451 = smul.addr %s450, 8
        %s452 = scalar_lea.vmem %s7, %s451
        %453 = vst [vmem:[%s452] sm:$0xff] %v440
        %454 = vst [vmem:[%s452 + $0x10] sm:$0xff] %v443
        %v455 = vld [vmem:[#allocation3] sm:$0xff]
        %v456 = vld [vmem:[#allocation3 + $0x8] sm:$0xff]
        %457 = vadd.xlane.f32.xlu0 %v440
        %v458 = vpop.xlane.xlu0 %457
        %459 = vadd.xlane.f32.xlu0 %v443
        %v460 = vpop.xlane.xlu0 %459
        %v461 = vadd.f32 %v455, %v458
        %v462 = vadd.f32 %v456, %v460
        %vm463 = vcmask 7168
        %464 = vst.msk [vmem:[#allocation3] sm:$0xff] %vm463, %v461
        %465 = vst.msk [vmem:[#allocation3 + $0x8] sm:$0xff] %vm463, %v462
        %v466 = vld [vmem:[#allocation4] sm:$0xff]
        %v467 = vld [vmem:[#allocation4 + $0x8] sm:$0xff]
        %v468 = vmul.f32 %v440, %v440
        %v469 = vmul.f32 %v443, %v443
        %470 = vadd.xlane.f32.xlu0 %v468
        %v471 = vpop.xlane.xlu0 %470
        %472 = vadd.xlane.f32.xlu0 %v469
        %v473 = vpop.xlane.xlu0 %472
        %v474 = vadd.f32 %v466, %v471
        %v475 = vadd.f32 %v467, %v473
        %476 = vst.msk [vmem:[#allocation4] sm:$0xff] %vm463, %v474
        %477 = vst.msk [vmem:[#allocation4 + $0x8] sm:$0xff] %vm463, %v475
        %p478 = scmp.eq.s32.totalorder %s22, 1
        %p479 = scmp.eq.s32.totalorder %s23, 1
        %p480 = pnand %p478, %p479
        %p481 = pneg %p480
        // Predicated region
        $region95: #{fused_se_conv_bn.1} parent=81 // pred_check
          _
        $region96: #{fused_se_conv_bn.1} parent=81 // pred_check_branch
          %483 = sbr.rel (%p480) target = $region98
        $region97: #{fused_se_conv_bn.1} parent=81 // pred_region
          %v484 = vld [vmem:[#allocation3] sm:$0xff]
          %v485 = vld [vmem:[#allocation3 + $0x8] sm:$0xff]
          %v486 = vmul.f32 %v484, 0.001953125
          %v487 = vmul.f32 %v485, 0.001953125
          %v488 = vld [vmem:[#allocation4] sm:$0xff]
          %v489 = vld [vmem:[#allocation4 + $0x8] sm:$0xff]
          %v490 = vmul.f32 %v488, 0.001953125
          %v491 = vmul.f32 %v489, 0.001953125
          %v492 = vmul.f32 %v486, %v486
          %v493 = vmul.f32 %v487, %v487
          %v494 = vsub.f32 %v490, %v492
          %v495 = vsub.f32 %v491, %v493
          %v496 = vmax.f32 %v494, 0.0
          %v497 = vmax.f32 %v495, 0.0
          %v498 = vadd.f32 %v496, 0.001
          %v499 = vadd.f32 %v497, 0.001
          %v500 = vrsqrt.pop %v498
          %v501 = vrsqrt.pop %v499
          %v502 = vld [vmem:[%s5] sm:$0xff]
          %v503 = vld [vmem:[%s5 + $0x8] sm:$0xff]
          %v504 = vmul.f32 %v502, %v500
          %v505 = vmul.f32 %v503, %v501
          %v506 = vld [vmem:[%s6] sm:$0xff]
          %v507 = vld [vmem:[%s6 + $0x8] sm:$0xff]
          %v508 = vmul.f32 %v486, %v504
          %v509 = vmul.f32 %v487, %v505
          %v510 = vsub.f32 %v506, %v508
          %v511 = vsub.f32 %v507, %v509
          %v512 = vld [vmem:[%s7] sm:$0xff]
          %v513 = vld [vmem:[%s7 + $0x8] sm:$0xff]
          %v514 = vld [vmem:[%s7 + $0x10] sm:$0xff]
          %v515 = vld [vmem:[%s7 + $0x18] sm:$0xff]
          %v516 = vld [vmem:[%s7 + $0x20] sm:$0xff]
          %v517 = vld [vmem:[%s7 + $0x28] sm:$0xff]
          %v518 = vld [vmem:[%s7 + $0x30] sm:$0xff]
          %v519 = vld [vmem:[%s7 + $0x38] sm:$0xff]
          %521 = vset.pattern.permute.xlu0 0
          %522 = vperm.xlu0 %521, %v504
          %v523 = vpop.permute.xlu0 %522
          %526 = vset.pattern.permute.xlu0 0
          %527 = vperm.xlu0 %526, %v505
          %v528 = vpop.permute.xlu0 %527
          %v530 = vmul.f32 %v512, %v523
          %v531 = vmul.f32 %v513, %v523
          %v532 = vmul.f32 %v514, %v528
          %v533 = vmul.f32 %v515, %v528
          %v534 = vmul.f32 %v516, %v523
          %v535 = vmul.f32 %v517, %v523
          %v536 = vmul.f32 %v518, %v528
          %v537 = vmul.f32 %v519, %v528
          %539 = vset.pattern.permute.xlu0 0
          %540 = vperm.xlu0 %539, %v510
          %v541 = vpop.permute.xlu0 %540
          %544 = vset.pattern.permute.xlu0 0
          %545 = vperm.xlu0 %544, %v511
          %v546 = vpop.permute.xlu0 %545
          %v548 = vadd.f32 %v530, %v541
          %v549 = vadd.f32 %v531, %v541
          %v550 = vadd.f32 %v532, %v546
          %v551 = vadd.f32 %v533, %v546
          %v552 = vadd.f32 %v534, %v541
          %v553 = vadd.f32 %v535, %v541
          %v554 = vadd.f32 %v536, %v546
          %v555 = vadd.f32 %v537, %v546
          %556 = vst [vmem:[%s7] sm:$0xff] %v548
          %557 = vst [vmem:[%s7 + $0x8] sm:$0xff] %v549
          %558 = vst [vmem:[%s7 + $0x10] sm:$0xff] %v550
          %559 = vst [vmem:[%s7 + $0x18] sm:$0xff] %v551
          %560 = vst [vmem:[%s7 + $0x20] sm:$0xff] %v552
          %561 = vst [vmem:[%s7 + $0x28] sm:$0xff] %v553
          %562 = vst [vmem:[%s7 + $0x30] sm:$0xff] %v554
          %563 = vst [vmem:[%s7 + $0x38] sm:$0xff] %v555
        $region98: #{fused_se_conv_bn.1} parent=81 // pred_fallthru
          _
        // Predicated region
        $region99: #{fused_se_conv_bn.1} parent=81 // pred_check
          %p564 = pneg %p202
        $region100: #{fused_se_conv_bn.1} parent=81 // pred_check_branch
          %566 = sbr.rel (%p564) target = $region102
        $region101: #{fused_se_conv_bn.1} parent=81 // pred_region
          _
        $region102: #{fused_se_conv_bn.1} parent=81 // pred_fallthru
          _
        // Predicated region
        $region103: #{fused_se_conv_bn.1} parent=81 // pred_check
          %p567 = pneg %p202
        $region104: #{fused_se_conv_bn.1} parent=81 // pred_check_branch
          %569 = sbr.rel (%p567) target = $region106
        $region105: #{fused_se_conv_bn.1} parent=81 // pred_region
          _
        $region106: #{fused_se_conv_bn.1} parent=81 // pred_fallthru
          _
      $region82: #{fused_se_conv_bn.1} parent=5 // pred_fallthru
        _
      %p570 = scmp.le.s32.totalorder 2, %s13
      // Predicated region
      $region107: #{fused_se_conv_bn.1} parent=5 // pred_check
        %p571 = pneg %p570
      $region108: #{fused_se_conv_bn.1} parent=5 // pred_check_branch
        %573 = sbr.rel (%p571) target = $region110
      $region109: #{fused_se_conv_bn.1} parent=5 // pred_region
        %s574 = ssub.s32 %s13, 2
      $region110: #{fused_se_conv_bn.1} parent=5 // pred_fallthru
        _
    $region6: #{fused_se_conv_bn.1} parent=1 // loop_footer
      %s17 = sadd.s32 1, %s13
    $region7: #{fused_se_conv_bn.1} parent=1 // loop_footer_branch
      %12 = sbr.rel target = $region3
    $region8: #{fused_se_conv_bn.1} parent=1 // loop_exit
      _

</llo_original>
